<compile_context>
chip_gen: v7x
topology: tpu7x:2x2x1
jax: 0.10.0
libtpu: 0.0.40
codegen_flags: <defaults>
</compile_context>

<pallas_src>
import functools

import jax
import jax.numpy as jnp
from jax.experimental import pallas as pl
from jax.experimental.pallas import tpu as pltpu

_EPS = 1e-12  # F.normalize default eps


def memory_kernel(topk, m_real, x_ref, mem_ref, mem_norm_t_ref, o_ref):
    x = x_ref[...].astype(jnp.float32)           # (TB, D)  query rows
    mem_norm_t = mem_norm_t_ref[...]             # (D, Mp)  pre-normalized memory^T
    tb = x.shape[0]
    mp = mem_norm_t.shape[1]

    # ---- L2-normalize query rows (matches F.normalize eps); rsqrt on the EUP ----
    sumsq = jnp.sum(x * x, axis=1, keepdims=True)
    x_norm = (x * jax.lax.rsqrt(jnp.maximum(sumsq, jnp.float32(_EPS * _EPS))))
    x_norm = x_norm.astype(mem_norm_t_ref.dtype)  # bf16 memory -> bf16 MXU inputs

    # ---- cosine similarity: ONE lane-dense MXU matmul (memory norm pre-applied) ----
    sim = jnp.dot(x_norm, mem_norm_t, preferred_element_type=jnp.float32)  # (TB, Mp)

    # ---- pack (quantized value, reversed column id) into one sortable int32 key
    #      so each top-k step is a single cross-lane max; ties -> lowest column,
    #      matching lax.top_k.  Value quantization is 2^-(28-idx_bits) (~5e-7). ----
    idx_field = pl.next_power_of_2(mp)
    idx_bits = idx_field.bit_length() - 1          # 7 for Mp=128
    frac_bits = 28 - idx_bits                      # keeps keys < 2^31 (cos in [-1,1])
    scale = jnp.float32(1 << frac_bits)
    inv_scale = jnp.float32(1.0 / (1 << frac_bits))

    col = jax.lax.broadcasted_iota(jnp.int32, (1, mp), 1)   # single (1,Mp) row; broadcasts
    rev_col = (mp - 1) - col
    q = ((sim + 2.0) * scale).astype(jnp.int32)             # monotone fixed-point encode
    keys = q * idx_field + rev_col                          # (TB, Mp) int32
    if m_real < mp:
        # zero-padded memory slots get a sentinel key so they can never be selected
        keys = jnp.where(col < m_real, keys, jnp.int32(-1))

    # ---- peeled iteration 0: its max IS the softmax stabilizer (weight = exp(0) = 1) ----
    key0 = jnp.max(keys, axis=1, keepdims=True)             # one cross-lane reduction
    row_max = (key0 >> idx_bits).astype(jnp.float32) * inv_scale - 2.0
    one_hot = rev_col == (key0 & (idx_field - 1))
    w = jnp.where(one_hot, jnp.float32(1.0), jnp.float32(0.0))   # (TB, Mp) scattered weights
    denom = jnp.full((tb, 1), 1.0, jnp.float32)
    keys = jnp.where(one_hot, jnp.int32(-1), keys)

    # ---- remaining k-1 selections: one reduction + one (TB,1) exp each ----
    for _ in range(topk - 1):                                # topk is small and static
        key_i = jnp.max(keys, axis=1, keepdims=True)
        cur = (key_i >> idx_bits).astype(jnp.float32) * inv_scale - 2.0
        e = jnp.exp(cur - row_max)                           # (TB,1) EUP exp (k total, not M)
        one_hot = rev_col == (key_i & (idx_field - 1))
        w = jnp.where(one_hot, e, w)
        denom = denom + e
        keys = jnp.where(one_hot, jnp.int32(-1), keys)

    # softmax normalization: per-row EUP reciprocal, no full-tile divide.
    # (approx=True is also fine when bf16-level output accuracy is acceptable.)
    w = w * pl.reciprocal(denom)

    # ---- readout: weighted sum of RAW memory rows == one lane-dense MXU matmul ----
    o_ref[...] = jnp.dot(w.astype(mem_ref.dtype), mem_ref[...],
                         preferred_element_type=jnp.float32).astype(o_ref.dtype)


def memory_module(x, memory, topk, block_b=None):
    """Pallas forward pass of MemoryModule. x: (B, D), memory: (M, D)."""
    B, D = x.shape
    M, D2 = memory.shape
    assert D == D2 and 1 <= topk <= M
    assert M <= 8192, "key packing reserves 28 bits total for value+index"

    # Pad memory slots to a multiple of 128 so every tile / matmul is lane-dense.
    Mp = ((M + 127) // 128) * 128
    mem_p = memory if Mp == M else jnp.pad(memory, ((0, Mp - M), (0, 0)))

    # One-time (hoisted) memory normalization + transpose, outside the grid loop.
    mem_f32 = mem_p.astype(jnp.float32)
    inv = 1.0 / jnp.maximum(
        jnp.sqrt(jnp.sum(mem_f32 * mem_f32, axis=1, keepdims=True)), _EPS)
    mem_norm_t = (mem_f32 * inv).astype(memory.dtype).T      # (D, Mp), zero on padded cols

    if block_b is None:
        block_b = min(128, B)
        # keep >= 2 grid steps so both v7x TensorCores get work
        if B == block_b and block_b % 16 == 0:
            block_b //= 2
    assert B % block_b == 0, "pad the batch to a multiple of block_b"

    kernel = functools.partial(memory_kernel, topk, M)
    # For production-sized M*D: add pipeline_mode=pl.Buffered(1) to the two
    # constant-index memory specs (single-buffer the resident table), raise
    # vmem_limit_bytes via CompilerParams, and on v7x consider dropping the
    # (D, Mp) operand in favor of a trans_b dot_general against mem_p alone.
    return pl.pallas_call(
        kernel,
        out_shape=jax.ShapeDtypeStruct((B, D), x.dtype),
        grid=(B // block_b,),
        in_specs=[
            pl.BlockSpec((block_b, D), lambda i: (i, 0)),    # query rows for this step
            pl.BlockSpec((Mp, D), lambda i: (0, 0)),         # raw memory (readout)
            pl.BlockSpec((D, Mp), lambda i: (0, 0)),         # normalized memory^T (sim)
        ],
        out_specs=pl.BlockSpec((block_b, D), lambda i: (i, 0)),
        compiler_params=pltpu.CompilerParams(
            dimension_semantics=("parallel",)),
    )(x, mem_p, mem_norm_t)


def memory_module_ref(x, memory, topk):
    """Pure-JAX reference with identical semantics to the PyTorch module."""
    mem_norm = memory / jnp.maximum(
        jnp.linalg.norm(memory, axis=1, keepdims=True), _EPS)
    x_norm = x / jnp.maximum(jnp.linalg.norm(x, axis=1, keepdims=True), _EPS)
    sim = jnp.matmul(x_norm, mem_norm.T, precision=jax.lax.Precision.HIGHEST)
    topk_sim, topk_idx = jax.lax.top_k(sim, topk)
    weights = jax.nn.softmax(topk_sim, axis=1)
    return jnp.sum(weights[..., None] * memory[topk_idx], axis=1)


if __name__ == "__main__":
    # Module defaults: mem_dim=256, mem_size=100, topk=10; small batch of 16.
    B, MEM_SIZE, MEM_DIM, TOPK = 16, 100, 256, 10
    key = jax.random.PRNGKey(0)
    km, kidx, kw, kn = jax.random.split(key, 4)

    # Memory bank with orthogonal rows (norm ~ sqrt(D)); each query is a noisy
    # positive mixture of exactly TOPK stored rows, so the top-k set is
    # numerically unambiguous and the check is robust to MXU rounding details.
    q_mat, _ = jnp.linalg.qr(jax.random.normal(km, (MEM_DIM, MEM_DIM), jnp.float32))
    memory = q_mat[:MEM_SIZE] * jnp.sqrt(jnp.float32(MEM_DIM))        # (M, D)
    member_idx = jax.vmap(lambda k: jax.random.permutation(k, MEM_SIZE)[:TOPK])(
        jax.random.split(kidx, B))                                    # (B, K) distinct rows
    mix = jax.random.uniform(kw, (B, TOPK), jnp.float32, 1.0, 2.0)
    x = (jnp.einsum("bk,bkd->bd", mix, memory[member_idx])
         + 0.5 * jax.random.normal(kn, (B, MEM_DIM), jnp.float32))

    out = jax.block_until_ready(memory_module(x, memory, TOPK))
    ref = memory_module_ref(x, memory, TOPK)

    assert out.shape == (B, MEM_DIM)
    assert bool(jnp.all(jnp.isfinite(out)))
    err = float(jnp.max(jnp.abs(out - ref)))
    # 2e-3 abs on O(1) outputs: covers MXU f32 multi-pass rounding differences
    # between Mosaic and XLA while still catching selection / normalization bugs
    # (those produce >= 1e-2 errors).
    assert err < 2e-3, f"max abs err {err}"
    print("KERNEL_OK")
</pallas_src>

<mosaic_0001>
module attributes {stable_mosaic.version = 11 : i64} {
  func.func @memory_kernel(%arg0: i32, %arg1: memref<8x256xf32, #tpu.memory_space<vmem>>, %arg2: memref<128x256xf32, #tpu.memory_space<vmem>>, %arg3: memref<256x128xf32, #tpu.memory_space<vmem>>, %arg4: memref<8x256xf32, #tpu.memory_space<vmem>>) attributes {dimension_semantics = [#tpu.dimension_semantics<parallel>], iteration_bounds = array<i64: 2>, scalar_prefetch = 0 : i64, scratch_operands = 0 : i64, tpu.core_type = #tpu.core_type<tc>, window_params = [{transform_indices = @transform_0, window_bounds = array<i64: 8, 256>}, {pipeline_mode = #tpu.pipeline_mode<synchronous>, transform_indices = @transform_1, window_bounds = array<i64: 128, 256>}, {pipeline_mode = #tpu.pipeline_mode<synchronous>, transform_indices = @transform_2, window_bounds = array<i64: 256, 128>}, {transform_indices = @transform_3, window_bounds = array<i64: 8, 256>}]} {
    %c0 = arith.constant 0 : index
    %c0_0 = arith.constant 0 : index
    %0 = vector.load %arg1[%c0, %c0_0] : memref<8x256xf32, #tpu.memory_space<vmem>>, vector<8x256xf32>
    %c0_1 = arith.constant 0 : index
    %c0_2 = arith.constant 0 : index
    %1 = vector.load %arg3[%c0_1, %c0_2] : memref<256x128xf32, #tpu.memory_space<vmem>>, vector<256x128xf32>
    %2 = arith.mulf %0, %0 : vector<8x256xf32>
    %cst = arith.constant dense<0.000000e+00> : vector<8xf32>
    %3 = vector.multi_reduction <add>, %2, %cst [1] : vector<8x256xf32> to vector<8xf32>
    %4 = vector.shape_cast %3 : vector<8xf32> to vector<8x1xf32>
    %cst_3 = arith.constant 1.000000e-24 : f32
    %5 = vector.broadcast %cst_3 : f32 to vector<8x1xf32>
    %6 = arith.maximumf %4, %5 : vector<8x1xf32>
    %7 = math.rsqrt %6 : vector<8x1xf32>
    %8 = vector.broadcast %7 : vector<8x1xf32> to vector<8x256xf32>
    %9 = arith.mulf %0, %8 : vector<8x256xf32>
    %cst_4 = arith.constant dense<0.000000e+00> : vector<8x128xf32>
    %10 = tpu.matmul %9, %1, %cst_4 {dimension_numbers = #tpu.dot_dimension_numbers<[1], [0], [0], [1], [0, 0, 1, 1], [], []>} : vector<8x256xf32>, vector<256x128xf32>, vector<8x128xf32> -> vector<8x128xf32>
    %11 = tpu.iota {dimensions = array<i32: 1>} : vector<1x128xi32>
    %c127_i32 = arith.constant 127 : i32
    %12 = vector.broadcast %c127_i32 : i32 to vector<1x128xi32>
    %13 = arith.subi %12, %11 : vector<1x128xi32>
    %cst_5 = arith.constant 2.000000e+00 : f32
    %14 = vector.broadcast %cst_5 : f32 to vector<8x128xf32>
    %15 = arith.addf %10, %14 : vector<8x128xf32>
    %cst_6 = arith.constant 0x4A000000 : f32
    %16 = vector.broadcast %cst_6 : f32 to vector<8x128xf32>
    %17 = arith.mulf %15, %16 : vector<8x128xf32>
    %18 = arith.fptosi %17 : vector<8x128xf32> to vector<8x128xi32>
    %c128_i32 = arith.constant 128 : i32
    %19 = vector.broadcast %c128_i32 : i32 to vector<8x128xi32>
    %20 = arith.muli %18, %19 : vector<8x128xi32>
    %21 = vector.broadcast %13 : vector<1x128xi32> to vector<8x128xi32>
    %22 = arith.addi %20, %21 : vector<8x128xi32>
    %c100_i32 = arith.constant 100 : i32
    %23 = vector.broadcast %c100_i32 : i32 to vector<1x128xi32>
    %24 = arith.cmpi slt, %11, %23 : vector<1x128xi32>
    %c-1_i32 = arith.constant -1 : i32
    %25 = vector.shape_cast %24 : vector<1x128xi1> to vector<1x128xi1>
    %26 = vector.broadcast %25 : vector<1x128xi1> to vector<8x128xi1>
    %27 = vector.broadcast %c-1_i32 : i32 to vector<8x128xi32>
    %28 = arith.select %26, %22, %27 : vector<8x128xi1>, vector<8x128xi32>
    %cst_7 = arith.constant dense<-2147483648> : vector<8xi32>
    %29 = vector.multi_reduction <maxsi>, %28, %cst_7 [1] : vector<8x128xi32> to vector<8xi32>
    %30 = vector.shape_cast %29 : vector<8xi32> to vector<8x1xi32>
    %c7_i32 = arith.constant 7 : i32
    %31 = vector.broadcast %c7_i32 : i32 to vector<8x1xi32>
    %32 = arith.shrsi %30, %31 : vector<8x1xi32>
    %33 = arith.sitofp %32 : vector<8x1xi32> to vector<8x1xf32>
    %cst_8 = arith.constant 4.76837158E-7 : f32
    %34 = vector.broadcast %cst_8 : f32 to vector<8x1xf32>
    %35 = arith.mulf %33, %34 : vector<8x1xf32>
    %cst_9 = arith.constant 2.000000e+00 : f32
    %36 = vector.broadcast %cst_9 : f32 to vector<8x1xf32>
    %37 = arith.subf %35, %36 : vector<8x1xf32>
    %c127_i32_10 = arith.constant 127 : i32
    %38 = vector.broadcast %c127_i32_10 : i32 to vector<8x1xi32>
    %39 = arith.andi %30, %38 : vector<8x1xi32>
    %40 = vector.broadcast %13 : vector<1x128xi32> to vector<8x128xi32>
    %41 = vector.broadcast %39 : vector<8x1xi32> to vector<8x128xi32>
    %42 = arith.cmpi eq, %40, %41 : vector<8x128xi32>
    %cst_11 = arith.constant 1.000000e+00 : f32
    %cst_12 = arith.constant 0.000000e+00 : f32
    %43 = vector.broadcast %cst_11 : f32 to vector<8x128xf32>
    %44 = vector.broadcast %cst_12 : f32 to vector<8x128xf32>
    %45 = arith.select %42, %43, %44 : vector<8x128xi1>, vector<8x128xf32>
    %cst_13 = arith.constant 1.000000e+00 : f32
    %46 = vector.broadcast %cst_13 : f32 to vector<8x1xf32>
    %c-1_i32_14 = arith.constant -1 : i32
    %47 = vector.broadcast %c-1_i32_14 : i32 to vector<8x128xi32>
    %48 = arith.select %42, %47, %28 : vector<8x128xi1>, vector<8x128xi32>
    %cst_15 = arith.constant dense<-2147483648> : vector<8xi32>
    %49 = vector.multi_reduction <maxsi>, %48, %cst_15 [1] : vector<8x128xi32> to vector<8xi32>
    %50 = vector.shape_cast %49 : vector<8xi32> to vector<8x1xi32>
    %c7_i32_16 = arith.constant 7 : i32
    %51 = vector.broadcast %c7_i32_16 : i32 to vector<8x1xi32>
    %52 = arith.shrsi %50, %51 : vector<8x1xi32>
    %53 = arith.sitofp %52 : vector<8x1xi32> to vector<8x1xf32>
    %cst_17 = arith.constant 4.76837158E-7 : f32
    %54 = vector.broadcast %cst_17 : f32 to vector<8x1xf32>
    %55 = arith.mulf %53, %54 : vector<8x1xf32>
    %cst_18 = arith.constant 2.000000e+00 : f32
    %56 = vector.broadcast %cst_18 : f32 to vector<8x1xf32>
    %57 = arith.subf %55, %56 : vector<8x1xf32>
    %58 = arith.subf %57, %37 : vector<8x1xf32>
    %59 = math.exp %58 : vector<8x1xf32>
    %c127_i32_19 = arith.constant 127 : i32
    %60 = vector.broadcast %c127_i32_19 : i32 to vector<8x1xi32>
    %61 = arith.andi %50, %60 : vector<8x1xi32>
    %62 = vector.broadcast %13 : vector<1x128xi32> to vector<8x128xi32>
    %63 = vector.broadcast %61 : vector<8x1xi32> to vector<8x128xi32>
    %64 = arith.cmpi eq, %62, %63 : vector<8x128xi32>
    %65 = vector.shape_cast %59 : vector<8x1xf32> to vector<8x1xf32>
    %66 = vector.broadcast %65 : vector<8x1xf32> to vector<8x128xf32>
    %67 = arith.select %64, %66, %45 : vector<8x128xi1>, vector<8x128xf32>
    %68 = arith.addf %46, %59 : vector<8x1xf32>
    %c-1_i32_20 = arith.constant -1 : i32
    %69 = vector.broadcast %c-1_i32_20 : i32 to vector<8x128xi32>
    %70 = arith.select %64, %69, %48 : vector<8x128xi1>, vector<8x128xi32>
    %cst_21 = arith.constant dense<-2147483648> : vector<8xi32>
    %71 = vector.multi_reduction <maxsi>, %70, %cst_21 [1] : vector<8x128xi32> to vector<8xi32>
    %72 = vector.shape_cast %71 : vector<8xi32> to vector<8x1xi32>
    %c7_i32_22 = arith.constant 7 : i32
    %73 = vector.broadcast %c7_i32_22 : i32 to vector<8x1xi32>
    %74 = arith.shrsi %72, %73 : vector<8x1xi32>
    %75 = arith.sitofp %74 : vector<8x1xi32> to vector<8x1xf32>
    %cst_23 = arith.constant 4.76837158E-7 : f32
    %76 = vector.broadcast %cst_23 : f32 to vector<8x1xf32>
    %77 = arith.mulf %75, %76 : vector<8x1xf32>
    %cst_24 = arith.constant 2.000000e+00 : f32
    %78 = vector.broadcast %cst_24 : f32 to vector<8x1xf32>
    %79 = arith.subf %77, %78 : vector<8x1xf32>
    %80 = arith.subf %79, %37 : vector<8x1xf32>
    %81 = math.exp %80 : vector<8x1xf32>
    %c127_i32_25 = arith.constant 127 : i32
    %82 = vector.broadcast %c127_i32_25 : i32 to vector<8x1xi32>
    %83 = arith.andi %72, %82 : vector<8x1xi32>
    %84 = vector.broadcast %13 : vector<1x128xi32> to vector<8x128xi32>
    %85 = vector.broadcast %83 : vector<8x1xi32> to vector<8x128xi32>
    %86 = arith.cmpi eq, %84, %85 : vector<8x128xi32>
    %87 = vector.shape_cast %81 : vector<8x1xf32> to vector<8x1xf32>
    %88 = vector.broadcast %87 : vector<8x1xf32> to vector<8x128xf32>
    %89 = arith.select %86, %88, %67 : vector<8x128xi1>, vector<8x128xf32>
    %90 = arith.addf %68, %81 : vector<8x1xf32>
    %c-1_i32_26 = arith.constant -1 : i32
    %91 = vector.broadcast %c-1_i32_26 : i32 to vector<8x128xi32>
    %92 = arith.select %86, %91, %70 : vector<8x128xi1>, vector<8x128xi32>
    %cst_27 = arith.constant dense<-2147483648> : vector<8xi32>
    %93 = vector.multi_reduction <maxsi>, %92, %cst_27 [1] : vector<8x128xi32> to vector<8xi32>
    %94 = vector.shape_cast %93 : vector<8xi32> to vector<8x1xi32>
    %c7_i32_28 = arith.constant 7 : i32
    %95 = vector.broadcast %c7_i32_28 : i32 to vector<8x1xi32>
    %96 = arith.shrsi %94, %95 : vector<8x1xi32>
    %97 = arith.sitofp %96 : vector<8x1xi32> to vector<8x1xf32>
    %cst_29 = arith.constant 4.76837158E-7 : f32
    %98 = vector.broadcast %cst_29 : f32 to vector<8x1xf32>
    %99 = arith.mulf %97, %98 : vector<8x1xf32>
    %cst_30 = arith.constant 2.000000e+00 : f32
    %100 = vector.broadcast %cst_30 : f32 to vector<8x1xf32>
    %101 = arith.subf %99, %100 : vector<8x1xf32>
    %102 = arith.subf %101, %37 : vector<8x1xf32>
    %103 = math.exp %102 : vector<8x1xf32>
    %c127_i32_31 = arith.constant 127 : i32
    %104 = vector.broadcast %c127_i32_31 : i32 to vector<8x1xi32>
    %105 = arith.andi %94, %104 : vector<8x1xi32>
    %106 = vector.broadcast %13 : vector<1x128xi32> to vector<8x128xi32>
    %107 = vector.broadcast %105 : vector<8x1xi32> to vector<8x128xi32>
    %108 = arith.cmpi eq, %106, %107 : vector<8x128xi32>
    %109 = vector.shape_cast %103 : vector<8x1xf32> to vector<8x1xf32>
    %110 = vector.broadcast %109 : vector<8x1xf32> to vector<8x128xf32>
    %111 = arith.select %108, %110, %89 : vector<8x128xi1>, vector<8x128xf32>
    %112 = arith.addf %90, %103 : vector<8x1xf32>
    %c-1_i32_32 = arith.constant -1 : i32
    %113 = vector.broadcast %c-1_i32_32 : i32 to vector<8x128xi32>
    %114 = arith.select %108, %113, %92 : vector<8x128xi1>, vector<8x128xi32>
    %cst_33 = arith.constant dense<-2147483648> : vector<8xi32>
    %115 = vector.multi_reduction <maxsi>, %114, %cst_33 [1] : vector<8x128xi32> to vector<8xi32>
    %116 = vector.shape_cast %115 : vector<8xi32> to vector<8x1xi32>
    %c7_i32_34 = arith.constant 7 : i32
    %117 = vector.broadcast %c7_i32_34 : i32 to vector<8x1xi32>
    %118 = arith.shrsi %116, %117 : vector<8x1xi32>
    %119 = arith.sitofp %118 : vector<8x1xi32> to vector<8x1xf32>
    %cst_35 = arith.constant 4.76837158E-7 : f32
    %120 = vector.broadcast %cst_35 : f32 to vector<8x1xf32>
    %121 = arith.mulf %119, %120 : vector<8x1xf32>
    %cst_36 = arith.constant 2.000000e+00 : f32
    %122 = vector.broadcast %cst_36 : f32 to vector<8x1xf32>
    %123 = arith.subf %121, %122 : vector<8x1xf32>
    %124 = arith.subf %123, %37 : vector<8x1xf32>
    %125 = math.exp %124 : vector<8x1xf32>
    %c127_i32_37 = arith.constant 127 : i32
    %126 = vector.broadcast %c127_i32_37 : i32 to vector<8x1xi32>
    %127 = arith.andi %116, %126 : vector<8x1xi32>
    %128 = vector.broadcast %13 : vector<1x128xi32> to vector<8x128xi32>
    %129 = vector.broadcast %127 : vector<8x1xi32> to vector<8x128xi32>
    %130 = arith.cmpi eq, %128, %129 : vector<8x128xi32>
    %131 = vector.shape_cast %125 : vector<8x1xf32> to vector<8x1xf32>
    %132 = vector.broadcast %131 : vector<8x1xf32> to vector<8x128xf32>
    %133 = arith.select %130, %132, %111 : vector<8x128xi1>, vector<8x128xf32>
    %134 = arith.addf %112, %125 : vector<8x1xf32>
    %c-1_i32_38 = arith.constant -1 : i32
    %135 = vector.broadcast %c-1_i32_38 : i32 to vector<8x128xi32>
    %136 = arith.select %130, %135, %114 : vector<8x128xi1>, vector<8x128xi32>
    %cst_39 = arith.constant dense<-2147483648> : vector<8xi32>
    %137 = vector.multi_reduction <maxsi>, %136, %cst_39 [1] : vector<8x128xi32> to vector<8xi32>
    %138 = vector.shape_cast %137 : vector<8xi32> to vector<8x1xi32>
    %c7_i32_40 = arith.constant 7 : i32
    %139 = vector.broadcast %c7_i32_40 : i32 to vector<8x1xi32>
    %140 = arith.shrsi %138, %139 : vector<8x1xi32>
    %141 = arith.sitofp %140 : vector<8x1xi32> to vector<8x1xf32>
    %cst_41 = arith.constant 4.76837158E-7 : f32
    %142 = vector.broadcast %cst_41 : f32 to vector<8x1xf32>
    %143 = arith.mulf %141, %142 : vector<8x1xf32>
    %cst_42 = arith.constant 2.000000e+00 : f32
    %144 = vector.broadcast %cst_42 : f32 to vector<8x1xf32>
    %145 = arith.subf %143, %144 : vector<8x1xf32>
    %146 = arith.subf %145, %37 : vector<8x1xf32>
    %147 = math.exp %146 : vector<8x1xf32>
    %c127_i32_43 = arith.constant 127 : i32
    %148 = vector.broadcast %c127_i32_43 : i32 to vector<8x1xi32>
    %149 = arith.andi %138, %148 : vector<8x1xi32>
    %150 = vector.broadcast %13 : vector<1x128xi32> to vector<8x128xi32>
    %151 = vector.broadcast %149 : vector<8x1xi32> to vector<8x128xi32>
    %152 = arith.cmpi eq, %150, %151 : vector<8x128xi32>
    %153 = vector.shape_cast %147 : vector<8x1xf32> to vector<8x1xf32>
    %154 = vector.broadcast %153 : vector<8x1xf32> to vector<8x128xf32>
    %155 = arith.select %152, %154, %133 : vector<8x128xi1>, vector<8x128xf32>
    %156 = arith.addf %134, %147 : vector<8x1xf32>
    %c-1_i32_44 = arith.constant -1 : i32
    %157 = vector.broadcast %c-1_i32_44 : i32 to vector<8x128xi32>
    %158 = arith.select %152, %157, %136 : vector<8x128xi1>, vector<8x128xi32>
    %cst_45 = arith.constant dense<-2147483648> : vector<8xi32>
    %159 = vector.multi_reduction <maxsi>, %158, %cst_45 [1] : vector<8x128xi32> to vector<8xi32>
    %160 = vector.shape_cast %159 : vector<8xi32> to vector<8x1xi32>
    %c7_i32_46 = arith.constant 7 : i32
    %161 = vector.broadcast %c7_i32_46 : i32 to vector<8x1xi32>
    %162 = arith.shrsi %160, %161 : vector<8x1xi32>
    %163 = arith.sitofp %162 : vector<8x1xi32> to vector<8x1xf32>
    %cst_47 = arith.constant 4.76837158E-7 : f32
    %164 = vector.broadcast %cst_47 : f32 to vector<8x1xf32>
    %165 = arith.mulf %163, %164 : vector<8x1xf32>
    %cst_48 = arith.constant 2.000000e+00 : f32
    %166 = vector.broadcast %cst_48 : f32 to vector<8x1xf32>
    %167 = arith.subf %165, %166 : vector<8x1xf32>
    %168 = arith.subf %167, %37 : vector<8x1xf32>
    %169 = math.exp %168 : vector<8x1xf32>
    %c127_i32_49 = arith.constant 127 : i32
    %170 = vector.broadcast %c127_i32_49 : i32 to vector<8x1xi32>
    %171 = arith.andi %160, %170 : vector<8x1xi32>
    %172 = vector.broadcast %13 : vector<1x128xi32> to vector<8x128xi32>
    %173 = vector.broadcast %171 : vector<8x1xi32> to vector<8x128xi32>
    %174 = arith.cmpi eq, %172, %173 : vector<8x128xi32>
    %175 = vector.shape_cast %169 : vector<8x1xf32> to vector<8x1xf32>
    %176 = vector.broadcast %175 : vector<8x1xf32> to vector<8x128xf32>
    %177 = arith.select %174, %176, %155 : vector<8x128xi1>, vector<8x128xf32>
    %178 = arith.addf %156, %169 : vector<8x1xf32>
    %c-1_i32_50 = arith.constant -1 : i32
    %179 = vector.broadcast %c-1_i32_50 : i32 to vector<8x128xi32>
    %180 = arith.select %174, %179, %158 : vector<8x128xi1>, vector<8x128xi32>
    %cst_51 = arith.constant dense<-2147483648> : vector<8xi32>
    %181 = vector.multi_reduction <maxsi>, %180, %cst_51 [1] : vector<8x128xi32> to vector<8xi32>
    %182 = vector.shape_cast %181 : vector<8xi32> to vector<8x1xi32>
    %c7_i32_52 = arith.constant 7 : i32
    %183 = vector.broadcast %c7_i32_52 : i32 to vector<8x1xi32>
    %184 = arith.shrsi %182, %183 : vector<8x1xi32>
    %185 = arith.sitofp %184 : vector<8x1xi32> to vector<8x1xf32>
    %cst_53 = arith.constant 4.76837158E-7 : f32
    %186 = vector.broadcast %cst_53 : f32 to vector<8x1xf32>
    %187 = arith.mulf %185, %186 : vector<8x1xf32>
    %cst_54 = arith.constant 2.000000e+00 : f32
    %188 = vector.broadcast %cst_54 : f32 to vector<8x1xf32>
    %189 = arith.subf %187, %188 : vector<8x1xf32>
    %190 = arith.subf %189, %37 : vector<8x1xf32>
    %191 = math.exp %190 : vector<8x1xf32>
    %c127_i32_55 = arith.constant 127 : i32
    %192 = vector.broadcast %c127_i32_55 : i32 to vector<8x1xi32>
    %193 = arith.andi %182, %192 : vector<8x1xi32>
    %194 = vector.broadcast %13 : vector<1x128xi32> to vector<8x128xi32>
    %195 = vector.broadcast %193 : vector<8x1xi32> to vector<8x128xi32>
    %196 = arith.cmpi eq, %194, %195 : vector<8x128xi32>
    %197 = vector.shape_cast %191 : vector<8x1xf32> to vector<8x1xf32>
    %198 = vector.broadcast %197 : vector<8x1xf32> to vector<8x128xf32>
    %199 = arith.select %196, %198, %177 : vector<8x128xi1>, vector<8x128xf32>
    %200 = arith.addf %178, %191 : vector<8x1xf32>
    %c-1_i32_56 = arith.constant -1 : i32
    %201 = vector.broadcast %c-1_i32_56 : i32 to vector<8x128xi32>
    %202 = arith.select %196, %201, %180 : vector<8x128xi1>, vector<8x128xi32>
    %cst_57 = arith.constant dense<-2147483648> : vector<8xi32>
    %203 = vector.multi_reduction <maxsi>, %202, %cst_57 [1] : vector<8x128xi32> to vector<8xi32>
    %204 = vector.shape_cast %203 : vector<8xi32> to vector<8x1xi32>
    %c7_i32_58 = arith.constant 7 : i32
    %205 = vector.broadcast %c7_i32_58 : i32 to vector<8x1xi32>
    %206 = arith.shrsi %204, %205 : vector<8x1xi32>
    %207 = arith.sitofp %206 : vector<8x1xi32> to vector<8x1xf32>
    %cst_59 = arith.constant 4.76837158E-7 : f32
    %208 = vector.broadcast %cst_59 : f32 to vector<8x1xf32>
    %209 = arith.mulf %207, %208 : vector<8x1xf32>
    %cst_60 = arith.constant 2.000000e+00 : f32
    %210 = vector.broadcast %cst_60 : f32 to vector<8x1xf32>
    %211 = arith.subf %209, %210 : vector<8x1xf32>
    %212 = arith.subf %211, %37 : vector<8x1xf32>
    %213 = math.exp %212 : vector<8x1xf32>
    %c127_i32_61 = arith.constant 127 : i32
    %214 = vector.broadcast %c127_i32_61 : i32 to vector<8x1xi32>
    %215 = arith.andi %204, %214 : vector<8x1xi32>
    %216 = vector.broadcast %13 : vector<1x128xi32> to vector<8x128xi32>
    %217 = vector.broadcast %215 : vector<8x1xi32> to vector<8x128xi32>
    %218 = arith.cmpi eq, %216, %217 : vector<8x128xi32>
    %219 = vector.shape_cast %213 : vector<8x1xf32> to vector<8x1xf32>
    %220 = vector.broadcast %219 : vector<8x1xf32> to vector<8x128xf32>
    %221 = arith.select %218, %220, %199 : vector<8x128xi1>, vector<8x128xf32>
    %222 = arith.addf %200, %213 : vector<8x1xf32>
    %c-1_i32_62 = arith.constant -1 : i32
    %223 = vector.broadcast %c-1_i32_62 : i32 to vector<8x128xi32>
    %224 = arith.select %218, %223, %202 : vector<8x128xi1>, vector<8x128xi32>
    %cst_63 = arith.constant dense<-2147483648> : vector<8xi32>
    %225 = vector.multi_reduction <maxsi>, %224, %cst_63 [1] : vector<8x128xi32> to vector<8xi32>
    %226 = vector.shape_cast %225 : vector<8xi32> to vector<8x1xi32>
    %c7_i32_64 = arith.constant 7 : i32
    %227 = vector.broadcast %c7_i32_64 : i32 to vector<8x1xi32>
    %228 = arith.shrsi %226, %227 : vector<8x1xi32>
    %229 = arith.sitofp %228 : vector<8x1xi32> to vector<8x1xf32>
    %cst_65 = arith.constant 4.76837158E-7 : f32
    %230 = vector.broadcast %cst_65 : f32 to vector<8x1xf32>
    %231 = arith.mulf %229, %230 : vector<8x1xf32>
    %cst_66 = arith.constant 2.000000e+00 : f32
    %232 = vector.broadcast %cst_66 : f32 to vector<8x1xf32>
    %233 = arith.subf %231, %232 : vector<8x1xf32>
    %234 = arith.subf %233, %37 : vector<8x1xf32>
    %235 = math.exp %234 : vector<8x1xf32>
    %c127_i32_67 = arith.constant 127 : i32
    %236 = vector.broadcast %c127_i32_67 : i32 to vector<8x1xi32>
    %237 = arith.andi %226, %236 : vector<8x1xi32>
    %238 = vector.broadcast %13 : vector<1x128xi32> to vector<8x128xi32>
    %239 = vector.broadcast %237 : vector<8x1xi32> to vector<8x128xi32>
    %240 = arith.cmpi eq, %238, %239 : vector<8x128xi32>
    %241 = vector.shape_cast %235 : vector<8x1xf32> to vector<8x1xf32>
    %242 = vector.broadcast %241 : vector<8x1xf32> to vector<8x128xf32>
    %243 = arith.select %240, %242, %221 : vector<8x128xi1>, vector<8x128xf32>
    %244 = arith.addf %222, %235 : vector<8x1xf32>
    %245 = tpu.reciprocal %244 : vector<8x1xf32> -> vector<8x1xf32>
    %246 = vector.broadcast %245 : vector<8x1xf32> to vector<8x128xf32>
    %247 = arith.mulf %243, %246 : vector<8x128xf32>
    %c0_68 = arith.constant 0 : index
    %c0_69 = arith.constant 0 : index
    %248 = vector.load %arg2[%c0_68, %c0_69] : memref<128x256xf32, #tpu.memory_space<vmem>>, vector<128x256xf32>
    %cst_70 = arith.constant dense<0.000000e+00> : vector<8x256xf32>
    %249 = tpu.matmul %247, %248, %cst_70 {dimension_numbers = #tpu.dot_dimension_numbers<[1], [0], [0], [1], [0, 0, 1, 1], [], []>} : vector<8x128xf32>, vector<128x256xf32>, vector<8x256xf32> -> vector<8x256xf32>
    %c0_71 = arith.constant 0 : index
    %c0_72 = arith.constant 0 : index
    %250 = vector.load %arg4[%c0_71, %c0_72] : memref<8x256xf32, #tpu.memory_space<vmem>>, vector<8x256xf32>
    tpu.vector_store %arg4[%c0_71, %c0_72], %249 {strides = array<i32>} : memref<8x256xf32, #tpu.memory_space<vmem>>, vector<8x256xf32>,
    return
  }
  func.func @transform_0(%arg0: i32) -> (i32, i32) {
    %c0_i32 = arith.constant 0 : i32
    %c0_i32_0 = arith.constant 0 : i32
    return %arg0, %c0_i32 : i32, i32
  }
  func.func @transform_1(%arg0: i32) -> (i32, i32) {
    %c0_i32 = arith.constant 0 : i32
    %c0_i32_0 = arith.constant 0 : i32
    %c0_i32_1 = arith.constant 0 : i32
    return %c0_i32, %c0_i32_0 : i32, i32
  }
  func.func @transform_2(%arg0: i32) -> (i32, i32) {
    %c0_i32 = arith.constant 0 : i32
    %c0_i32_0 = arith.constant 0 : i32
    %c0_i32_1 = arith.constant 0 : i32
    return %c0_i32, %c0_i32_0 : i32, i32
  }
  func.func @transform_3(%arg0: i32) -> (i32, i32) {
    %c0_i32 = arith.constant 0 : i32
    %c0_i32_0 = arith.constant 0 : i32
    return %arg0, %c0_i32 : i32, i32
  }
}

</mosaic_0001>

<llo_original>
// kernel: tpu_custom_call.1
$region0: #{tpu_custom_call.1}
  #allocation0 [shape = 'u32[]', space=smem, size = 0x4, offset = 0x4, fixed_abs, tag = 'smem constant byte address 0x4 - core index']
  #allocation1 [shape = 'u32[144,128]{1,0:T(1,128)}', space=vmem, size = 0x12000, scoped, tag = 'internal scratch']
  %s0 = inlined_call_operand.hbm [shape: f32[16,256], index: 0, kind: input, shape index: {}]
  %s1 = inlined_call_operand.hbm [shape: f32[128,256], index: 1, kind: input, shape index: {}]
  %s2 = inlined_call_operand.hbm [shape: f32[256,128], index: 2, kind: input, shape index: {}]
  %s3 = inlined_call_operand.hbm [shape: f32[16,256], index: 3, kind: output, shape index: {}]
  %s4 = sld [smem:[#allocation0]]
  $region57: #{tpu_custom_call.1} parent=0
    _
  %s6 = ssub.s32 1, %s4
  %s7 = scalar_select 0, %s6, %s4
  $region1: #{tpu_custom_call.1} parent=0
    #allocation2 [shape = 'u8[16384]{0}', space=vmem, size = 0x4000, scoped, tag = 'input window, operand 0']
    #allocation3 [shape = 's32[2]{0}', space=sflag, size = 0x8, scoped, tag = 'scoped memory for tpu_custom_call.1']
    #allocation4 [shape = 's32[2]{0}', space=sflag, size = 0x8, scoped, tag = 'scoped memory for tpu_custom_call.1']
    #allocation5 [shape = 'u8[131072]{0}', space=vmem, size = 0x20000, scoped, tag = 'input window, operand 1, single buffered']
    #allocation6 [shape = 's32[1]{0}', space=sflag, size = 0x4, scoped, tag = 'scoped memory for tpu_custom_call.1']
    #allocation7 [shape = 'u8[131072]{0}', space=vmem, size = 0x20000, scoped, tag = 'input window, operand 2, single buffered']
    #allocation8 [shape = 'u8[16384]{0}', space=vmem, size = 0x4000, scoped, tag = 'output window, operand 0']
    %8 = vsyncpa [#allocation3], 0
    %s9 = scalar_lea.sflag [#allocation3], 1
    %10 = vsyncpa %s9, 0
    %11 = vsyncpa [#allocation6], 0
    %12 = vsyncpa [#allocation4], 0
    %s13 = scalar_lea.sflag [#allocation4], 1
    %14 = vsyncpa %s13, 0
    loop: start=0, step=1, limit=4
    $region2: #{tpu_custom_call.1} parent=1 // loop_pre_header
      _
    $region3: #{tpu_custom_call.1} parent=1 // loop_header
      %s16 = sphi 0, %s20
      %p17 = scmp.ge.s32.totalorder %s16, 4
      %s26 = sphi 0, %s28
      %s29 = sphi 0, %s26
      %s30 = sphi 0, %s29
      %s46 = sphi 0, %s30
      %s50 = sphi 0, %s50
      %s52 = sphi 0, %s50
      %s53 = sphi 0, %s52
      %s67 = sphi 0, %s53
      %s71 = sphi 0, %s71
      %s73 = sphi 0, %s71
      %s74 = sphi 0, %s73
      %s88 = sphi 0, %s74
      %s94 = sphi 0, %s96
      %s97 = sphi 0, %s94
      %s98 = sphi 0, %s97
      %s114 = sphi 0, %s98
    $region4: #{tpu_custom_call.1} parent=1 // loop_header_branch
      %19 = sbr.rel (%p17) target = $region8
    $region5: #{tpu_custom_call.1} parent=1 // loop_body
      %s21 = ssub.s32 %s16, 1
      %s22 = ssub.s32 %s16, 2
      %s23 = sadd.s32 %s16, 1
      %s24 = ssub.s32 %s16, %s23
      %p25 = scmp.eq.s32.totalorder %s24, 0
      %s27 = sadd.s32 %s26, 1
      %s28 = scalar_select %p25, %s26, %s27
      %p31 = pneg %p25
      %p32 = scmp.eq.s32.totalorder %s16, 1
      %p33 = por %p31, %p32
      %p34 = scmp.ne.s32.totalorder %s26, %s29
      %p35 = scmp.eq.s32.totalorder %s16, 0
      %p36 = por %p34, %p35
      %p37 = scmp.ne.s32.totalorder %s26, %s29
      %p38 = scmp.eq.s32.totalorder %s21, 1
      %p39 = por %p37, %p38
      %p40 = scmp.ne.s32.totalorder %s29, %s30
      %p41 = scmp.eq.s32.totalorder %s21, 0
      %p42 = por %p40, %p41
      %p43 = scmp.ne.s32.totalorder %s29, %s30
      %p44 = scmp.eq.s32.totalorder %s22, 1
      %p45 = por %p43, %p44
      %p47 = scmp.ne.s32.totalorder %s30, %s46
      %p48 = scmp.eq.s32.totalorder %s22, 0
      %p49 = por %p47, %p48
      %s51 = sadd.s32 %s50, 1
      %p54 = scmp.eq.s32.totalorder %s16, 1
      %p55 = scmp.ne.s32.totalorder %s50, %s52
      %p56 = scmp.eq.s32.totalorder %s16, 0
      %p57 = por %p55, %p56
      %p58 = scmp.ne.s32.totalorder %s50, %s52
      %p59 = scmp.eq.s32.totalorder %s21, 1
      %p60 = por %p58, %p59
      %p61 = scmp.ne.s32.totalorder %s52, %s53
      %p62 = scmp.eq.s32.totalorder %s21, 0
      %p63 = por %p61, %p62
      %p64 = scmp.ne.s32.totalorder %s52, %s53
      %p65 = scmp.eq.s32.totalorder %s22, 1
      %p66 = por %p64, %p65
      %p68 = scmp.ne.s32.totalorder %s53, %s67
      %p69 = scmp.eq.s32.totalorder %s22, 0
      %p70 = por %p68, %p69
      %s72 = sadd.s32 %s71, 1
      %p75 = scmp.eq.s32.totalorder %s16, 1
      %p76 = scmp.ne.s32.totalorder %s71, %s73
      %p77 = scmp.eq.s32.totalorder %s16, 0
      %p78 = por %p76, %p77
      %p79 = scmp.ne.s32.totalorder %s71, %s73
      %p80 = scmp.eq.s32.totalorder %s21, 1
      %p81 = por %p79, %p80
      %p82 = scmp.ne.s32.totalorder %s73, %s74
      %p83 = scmp.eq.s32.totalorder %s21, 0
      %p84 = por %p82, %p83
      %p85 = scmp.ne.s32.totalorder %s73, %s74
      %p86 = scmp.eq.s32.totalorder %s22, 1
      %p87 = por %p85, %p86
      %p89 = scmp.ne.s32.totalorder %s74, %s88
      %p90 = scmp.eq.s32.totalorder %s22, 0
      %p91 = por %p89, %p90
      %s92 = ssub.s32 %s16, %s23
      %p93 = scmp.eq.s32.totalorder %s92, 0
      %s95 = sadd.s32 %s94, 1
      %s96 = scalar_select %p93, %s94, %s95
      %p99 = pneg %p93
      %p100 = scmp.eq.s32.totalorder %s16, 1
      %p101 = por %p99, %p100
      %p102 = scmp.ne.s32.totalorder %s94, %s97
      %p103 = scmp.eq.s32.totalorder %s16, 0
      %p104 = por %p102, %p103
      %p105 = scmp.ne.s32.totalorder %s94, %s97
      %p106 = scmp.eq.s32.totalorder %s21, 1
      %p107 = por %p105, %p106
      %p108 = scmp.ne.s32.totalorder %s97, %s98
      %p109 = scmp.eq.s32.totalorder %s21, 0
      %p110 = por %p108, %p109
      %p111 = scmp.ne.s32.totalorder %s97, %s98
      %p112 = scmp.eq.s32.totalorder %s22, 1
      %p113 = por %p111, %p112
      %p115 = scmp.ne.s32.totalorder %s98, %s114
      %p116 = scmp.eq.s32.totalorder %s22, 0
      %p117 = por %p115, %p116
      %p118 = scmp.le.s32.totalorder 1, %s16
      %p119 = scmp.lt.s32.totalorder %s16, 3
      %p120 = pnand %p118, %p119
      %p121 = pneg %p120
      // Predicated region
      $region9: #{tpu_custom_call.1} parent=5 // pred_check
        _
      $region10: #{tpu_custom_call.1} parent=5 // pred_check_branch
        %123 = sbr.rel (%p120) target = $region12
      $region11: #{tpu_custom_call.1} parent=5 // pred_region
        %s124 = ssub.s32 %s16, 1
        // Predicated region
        $region13: #{tpu_custom_call.1} parent=11 // pred_check
          %p125 = pneg %p63
        $region14: #{tpu_custom_call.1} parent=11 // pred_check_branch
          %127 = sbr.rel (%p125) target = $region16
        $region15: #{tpu_custom_call.1} parent=11 // pred_region
          %s129 = ssub.s32 4096, 4096
          %130 = vsyncadd [#allocation6], %s129
          %s131 = sshll.u32 [#allocation5], 4
          %s132 = int_to_ptr.vmem [resolvable:$true] %s131
          %137 = dma.hbm_to_vmem [thread:$0]  %s1, 4096, %s132, [#allocation6], 256, 256, 16
        $region16: #{tpu_custom_call.1} parent=11 // pred_fallthru
          _
        // Predicated region
        $region17: #{tpu_custom_call.1} parent=11 // pred_check
          %p138 = pneg %p84
        $region18: #{tpu_custom_call.1} parent=11 // pred_check_branch
          %140 = sbr.rel (%p138) target = $region20
        $region19: #{tpu_custom_call.1} parent=11 // pred_region
          %s142 = ssub.s32 4096, 4096
          %143 = vsyncadd [#allocation6], %s142
          %s144 = sshll.u32 [#allocation7], 4
          %s145 = int_to_ptr.vmem [resolvable:$true] %s144
          %150 = dma.hbm_to_vmem [thread:$0]  %s2, 4096, %s145, [#allocation6], 128, 128, 8
        $region20: #{tpu_custom_call.1} parent=11 // pred_fallthru
          _
      $region12: #{tpu_custom_call.1} parent=5 // pred_fallthru
        _
      %p151 = scmp.lt.s32.totalorder %s16, 2
      // Predicated region
      $region21: #{tpu_custom_call.1} parent=5 // pred_check
        %p152 = pneg %p151
      $region22: #{tpu_custom_call.1} parent=5 // pred_check_branch
        %154 = sbr.rel (%p152) target = $region24
      $region23: #{tpu_custom_call.1} parent=5 // pred_region
        // Predicated region
        $region25: #{tpu_custom_call.1} parent=23 // pred_check
          %p155 = pneg %p36
        $region26: #{tpu_custom_call.1} parent=23 // pred_check_branch
          %157 = sbr.rel (%p155) target = $region28
        $region27: #{tpu_custom_call.1} parent=23 // pred_region
          %s158 = sand.u32 %s26, 1
          %s159 = scalar_lea.sflag [#allocation3], %s158
          %s160 = sand.u32 %s26, 1
          %s161 = smul.addr %s160, 16
          %s162 = scalar_lea.vmem [#allocation2], %s161
          %s164 = ssub.s32 256, 256
          %165 = vsyncadd %s159, %s164
          %s166 = smul.addr %s16, 2
          %s167 = smul.addr %s166, 128
          %s168 = scalar_lea.hbm %s0, %s167
          %s170 = sshll.u32 %s162, 4
          %s171 = int_to_ptr.vmem [resolvable:$true] %s170
          %173 = dma.hbm_to_vmem [thread:$0]  %s168, 256, %s171, %s159
        $region28: #{tpu_custom_call.1} parent=23 // pred_fallthru
          _
      $region24: #{tpu_custom_call.1} parent=5 // pred_fallthru
        _
      %p174 = scmp.le.s32.totalorder 1, %s16
      %p175 = scmp.lt.s32.totalorder %s16, 3
      %p176 = pnand %p174, %p175
      %p177 = pneg %p176
      // Predicated region
      $region29: #{tpu_custom_call.1} parent=5 // pred_check
        _
      $region30: #{tpu_custom_call.1} parent=5 // pred_check_branch
        %179 = sbr.rel (%p176) target = $region32
      $region31: #{tpu_custom_call.1} parent=5 // pred_region
        %s180 = ssub.s32 %s16, 1
        %s181 = sand.u32 %s29, 1
        %s182 = scalar_lea.sflag [#allocation3], %s181
        %s183 = sand.u32 %s29, 1
        %s184 = smul.addr %s183, 16
        %s185 = scalar_lea.vmem [#allocation2], %s184
        // Predicated region
        $region33: #{tpu_custom_call.1} parent=31 // pred_check
          %p186 = pneg %p42
        $region34: #{tpu_custom_call.1} parent=31 // pred_check_branch
          %188 = sbr.rel (%p186) target = $region36
        $region35: #{tpu_custom_call.1} parent=31 // pred_region
          %189 = dma.done %s182, 256
        $region36: #{tpu_custom_call.1} parent=31 // pred_fallthru
          _
        // Predicated region
        $region37: #{tpu_custom_call.1} parent=31 // pred_check
          %p190 = pneg %p63
        $region38: #{tpu_custom_call.1} parent=31 // pred_check_branch
          %192 = sbr.rel (%p190) target = $region40
        $region39: #{tpu_custom_call.1} parent=31 // pred_region
          %193 = dma.done [#allocation6], 4096
        $region40: #{tpu_custom_call.1} parent=31 // pred_fallthru
          _
        // Predicated region
        $region41: #{tpu_custom_call.1} parent=31 // pred_check
          %p194 = pneg %p84
        $region42: #{tpu_custom_call.1} parent=31 // pred_check_branch
          %196 = sbr.rel (%p194) target = $region44
        $region43: #{tpu_custom_call.1} parent=31 // pred_region
          %197 = dma.done [#allocation6], 4096
        $region44: #{tpu_custom_call.1} parent=31 // pred_fallthru
          _
        %s198 = sand.u32 %s29, 1
        %s199 = scalar_lea.sflag [#allocation3], %s198
        %s200 = sand.u32 %s29, 1
        %s201 = smul.addr %s200, 16
        %s202 = scalar_lea.vmem [#allocation2], %s201
        %p203 = pneg %p42
        %p204 = pneg %p39
        %p205 = pneg %p63
        %p206 = pneg %p60
        %p207 = pneg %p84
        %p208 = pneg %p81
        %p209 = pneg %p110
        %p210 = pneg %p107
        %s211 = sand.u32 %s97, 1
        %s212 = scalar_lea.sflag [#allocation4], %s211
        %s213 = sand.u32 %s97, 1
        %s214 = smul.addr %s213, 16
        %s215 = scalar_lea.vmem [#allocation8], %s214
        %v216 = vld [vmem:[%s185] sm:$0xff]
        %v217 = vld [vmem:[%s185 + $0x8] sm:$0xff]
        %v218 = vld [vmem:[#allocation7] sm:$0xff]
        %v219 = vld [vmem:[#allocation7 + $0x8] sm:$0xff]
        %v220 = vld [vmem:[#allocation7 + $0x10] sm:$0xff]
        %v221 = vld [vmem:[#allocation7 + $0x18] sm:$0xff]
        %v222 = vld [vmem:[#allocation7 + $0x20] sm:$0xff]
        %v223 = vld [vmem:[#allocation7 + $0x28] sm:$0xff]
        %v224 = vld [vmem:[#allocation7 + $0x30] sm:$0xff]
        %v225 = vld [vmem:[#allocation7 + $0x38] sm:$0xff]
        %v226 = vld [vmem:[#allocation7 + $0x40] sm:$0xff]
        %v227 = vld [vmem:[#allocation7 + $0x48] sm:$0xff]
        %v228 = vld [vmem:[#allocation7 + $0x50] sm:$0xff]
        %v229 = vld [vmem:[#allocation7 + $0x58] sm:$0xff]
        %v230 = vld [vmem:[#allocation7 + $0x60] sm:$0xff]
        %v231 = vld [vmem:[#allocation7 + $0x68] sm:$0xff]
        %v232 = vld [vmem:[#allocation7 + $0x70] sm:$0xff]
        %v233 = vld [vmem:[#allocation7 + $0x78] sm:$0xff]
        %v234 = vld [vmem:[#allocation7 + $0x80] sm:$0xff]
        %v235 = vld [vmem:[#allocation7 + $0x88] sm:$0xff]
        %v236 = vld [vmem:[#allocation7 + $0x90] sm:$0xff]
        %v237 = vld [vmem:[#allocation7 + $0x98] sm:$0xff]
        %v238 = vld [vmem:[#allocation7 + $0xa0] sm:$0xff]
        %v239 = vld [vmem:[#allocation7 + $0xa8] sm:$0xff]
        %v240 = vld [vmem:[#allocation7 + $0xb0] sm:$0xff]
        %v241 = vld [vmem:[#allocation7 + $0xb8] sm:$0xff]
        %v242 = vld [vmem:[#allocation7 + $0xc0] sm:$0xff]
        %v243 = vld [vmem:[#allocation7 + $0xc8] sm:$0xff]
        %v244 = vld [vmem:[#allocation7 + $0xd0] sm:$0xff]
        %v245 = vld [vmem:[#allocation7 + $0xd8] sm:$0xff]
        %v246 = vld [vmem:[#allocation7 + $0xe0] sm:$0xff]
        %v247 = vld [vmem:[#allocation7 + $0xe8] sm:$0xff]
        %v248 = vld [vmem:[#allocation7 + $0xf0] sm:$0xff]
        %v249 = vld [vmem:[#allocation7 + $0xf8] sm:$0xff]
        %v250 = vmul.f32 %v216, %v216
        %v251 = vmul.f32 %v217, %v217
        %v252 = vadd.f32 %v250, %v251
        %253 = vadd.xlane.f32.xlu0 %v252
        %v254 = vpop.xlane.xlu0 %253
        %v255 = vmax.f32 %v254, 1e-24
        %v256 = vrsqrt.pop %v255
        %v257 = vmul.f32 %v216, %v256
        %v258 = vmul.f32 %v217, %v256
        %v259 = vlaneseq
        %v260 = vand.u32 %v259, 127
        %v261 = vsub.s32 127, %v260
        %262 = vmatprep.subr.mxu0 0.0
        %263 = vmatpush1.msra.mxu0 %v218
        %264 = vmatprep.subr.mxu0 0.0
        %265 = vmatpush1.msra.mxu0 %v219
        %266 = vmatprep.subr.mxu0 0.0
        %267 = vmatpush1.msra.mxu0 %v220
        %268 = vmatprep.subr.mxu0 0.0
        %269 = vmatpush1.msra.mxu0 %v221
        %270 = vmatprep.subr.mxu0 0.0
        %271 = vmatpush1.msra.mxu0 %v222
        %272 = vmatprep.subr.mxu0 0.0
        %273 = vmatpush1.msra.mxu0 %v223
        %274 = vmatprep.subr.mxu0 0.0
        %275 = vmatpush1.msra.mxu0 %v224
        %276 = vmatprep.subr.mxu0 0.0
        %277 = vmatpush1.msra.mxu0 %v225
        %278 = vmatprep.subr.mxu0 0.0
        %279 = vmatpush1.msra.mxu0 %v226
        %280 = vmatprep.subr.mxu0 0.0
        %281 = vmatpush1.msra.mxu0 %v227
        %282 = vmatprep.subr.mxu0 0.0
        %283 = vmatpush1.msra.mxu0 %v228
        %284 = vmatprep.subr.mxu0 0.0
        %285 = vmatpush1.msra.mxu0 %v229
        %286 = vmatprep.subr.mxu0 0.0
        %287 = vmatpush1.msra.mxu0 %v230
        %288 = vmatprep.subr.mxu0 0.0
        %289 = vmatpush1.msra.mxu0 %v231
        %290 = vmatprep.subr.mxu0 0.0
        %291 = vmatpush1.msra.mxu0 %v232
        %292 = vmatprep.subr.mxu0 0.0
        %293 = vmatpush1.msra.mxu0 %v233
        %294 = vmatprep.subr.mxu0 0.0
        %295 = vmatpush1.msra.mxu0 %v234
        %296 = vmatprep.subr.mxu0 0.0
        %297 = vmatpush1.msra.mxu0 %v235
        %298 = vmatprep.subr.mxu0 0.0
        %299 = vmatpush1.msra.mxu0 %v236
        %300 = vmatprep.subr.mxu0 0.0
        %301 = vmatpush1.msra.mxu0 %v237
        %302 = vmatprep.subr.mxu0 0.0
        %303 = vmatpush1.msra.mxu0 %v238
        %304 = vmatprep.subr.mxu0 0.0
        %305 = vmatpush1.msra.mxu0 %v239
        %306 = vmatprep.subr.mxu0 0.0
        %307 = vmatpush1.msra.mxu0 %v240
        %308 = vmatprep.subr.mxu0 0.0
        %309 = vmatpush1.msra.mxu0 %v241
        %310 = vmatprep.subr.mxu0 0.0
        %311 = vmatpush1.msra.mxu0 %v242
        %312 = vmatprep.subr.mxu0 0.0
        %313 = vmatpush1.msra.mxu0 %v243
        %314 = vmatprep.subr.mxu0 0.0
        %315 = vmatpush1.msra.mxu0 %v244
        %316 = vmatprep.subr.mxu0 0.0
        %317 = vmatpush1.msra.mxu0 %v245
        %318 = vmatprep.subr.mxu0 0.0
        %319 = vmatpush1.msra.mxu0 %v246
        %320 = vmatprep.subr.mxu0 0.0
        %321 = vmatpush1.msra.mxu0 %v247
        %322 = vmatprep.subr.mxu0 0.0
        %323 = vmatpush1.msra.mxu0 %v248
        %324 = vmatprep.subr.mxu0 0.0
        %325 = vmatpush1.msra.mxu0 %v249
        %326 = vmatprep.mubr.f32.mxu0 %v258
        %327 = vmatmul.mubr.f32.gmra.mrb[0].mxu0 %v257
        %v328 = vpop.f32.mrb[0].mxu0
        %v329 = vadd.f32 2.0, %v328
        %v330 = vpop.f32.mrb[0].mxu0
        %331 = vdwg.mxu0
        %v332 = vmul.f32 %v329, 2097152.0
        %v333 = vcvt.f32.s32.to.zero.pseudo %v332
        %v334 = vmul.u32 %v333, 128
        %v335 = vadd.s32 %v334, %v261
        %vm336 = vcmp.lt.s32.totalorder %v260, 100
        %v337 = vsel %vm336, 1, 0
        %vm338 = vcmp.eq.s32.totalorder %v337, 1
        %v339 = vsel %vm338, %v335, 4294967295
        %v340 = vand.u32 %v339, 65535
        %v341 = vshra.s32 %v339, 16
        %v342 = vcvt.s32.f32 %v340
        %v343 = vcvt.s32.f32 %v341
        %344 = vmax.xlane.f32.xlu0 %v343
        %v345 = vpop.xlane.xlu0 %344
        %vm346 = vcmp.eq.f32.partialorder %v343, %v345
        %v347 = vsel %vm346, %v342, -inf
        %348 = vmax.xlane.f32.xlu0 %v347
        %v349 = vpop.xlane.xlu0 %348
        %v350 = vcvt.f32.s32 %v349
        %v351 = vcvt.f32.s32 %v345
        %v352 = vshll.u32 %v351, 16
        %v353 = vadd.s32 %v352, %v350
        %v354 = vshra.s32 %v353, 7
        %v355 = vcvt.s32.f32 %v354
        %v356 = vmul.f32 %v355, 4.7683716e-07
        %v357 = vsub.f32 %v356, 2.0
        %v358 = vand.u32 %v353, 127
        %vm359 = vcmp.eq.s32.totalorder %v261, %v358
        %v360 = vsel %vm359, 1.0, 0.0
        %v361 = vsel %vm359, 4294967295, %v339
        %v362 = vand.u32 %v361, 65535
        %v363 = vshra.s32 %v361, 16
        %v364 = vcvt.s32.f32 %v362
        %v365 = vcvt.s32.f32 %v363
        %366 = vmax.xlane.f32.xlu0 %v365
        %v367 = vpop.xlane.xlu0 %366
        %vm368 = vcmp.eq.f32.partialorder %v365, %v367
        %v369 = vsel %vm368, %v364, -inf
        %370 = vmax.xlane.f32.xlu0 %v369
        %v371 = vpop.xlane.xlu0 %370
        %v372 = vcvt.f32.s32 %v371
        %v373 = vcvt.f32.s32 %v367
        %v374 = vshll.u32 %v373, 16
        %v375 = vadd.s32 %v374, %v372
        %v376 = vshra.s32 %v375, 7
        %v377 = vcvt.s32.f32 %v376
        %v378 = vmul.f32 %v377, 4.7683716e-07
        %v379 = vsub.f32 %v378, 2.0
        %v380 = vsub.f32 %v379, %v357
        %v381 = vmul.f32 %v380, 1.442695
        %v382 = vpow.pop %v381
        %v383 = vand.u32 %v375, 127
        %vm384 = vcmp.eq.s32.totalorder %v261, %v383
        %v385 = vsel %vm384, %v382, %v360
        %v386 = vadd.f32 %v382, 1.0
        %v387 = vsel %vm384, 4294967295, %v361
        %v388 = vand.u32 %v387, 65535
        %v389 = vshra.s32 %v387, 16
        %v390 = vcvt.s32.f32 %v388
        %v391 = vcvt.s32.f32 %v389
        %392 = vmax.xlane.f32.xlu0 %v391
        %v393 = vpop.xlane.xlu0 %392
        %vm394 = vcmp.eq.f32.partialorder %v391, %v393
        %v395 = vsel %vm394, %v390, -inf
        %396 = vmax.xlane.f32.xlu0 %v395
        %v397 = vpop.xlane.xlu0 %396
        %v398 = vcvt.f32.s32 %v397
        %v399 = vcvt.f32.s32 %v393
        %v400 = vshll.u32 %v399, 16
        %v401 = vadd.s32 %v400, %v398
        %v402 = vshra.s32 %v401, 7
        %v403 = vcvt.s32.f32 %v402
        %v404 = vmul.f32 %v403, 4.7683716e-07
        %v405 = vsub.f32 %v404, 2.0
        %v406 = vsub.f32 %v405, %v357
        %v407 = vmul.f32 %v406, 1.442695
        %v408 = vpow.pop %v407
        %v409 = vand.u32 %v401, 127
        %vm410 = vcmp.eq.s32.totalorder %v261, %v409
        %v411 = vsel %vm410, %v408, %v385
        %v412 = vadd.f32 %v386, %v408
        %v413 = vsel %vm410, 4294967295, %v387
        %v414 = vand.u32 %v413, 65535
        %v415 = vshra.s32 %v413, 16
        %v416 = vcvt.s32.f32 %v414
        %v417 = vcvt.s32.f32 %v415
        %418 = vmax.xlane.f32.xlu0 %v417
        %v419 = vpop.xlane.xlu0 %418
        %vm420 = vcmp.eq.f32.partialorder %v417, %v419
        %v421 = vsel %vm420, %v416, -inf
        %422 = vmax.xlane.f32.xlu0 %v421
        %v423 = vpop.xlane.xlu0 %422
        %v424 = vcvt.f32.s32 %v423
        %v425 = vcvt.f32.s32 %v419
        %v426 = vshll.u32 %v425, 16
        %v427 = vadd.s32 %v426, %v424
        %v428 = vshra.s32 %v427, 7
        %v429 = vcvt.s32.f32 %v428
        %v430 = vmul.f32 %v429, 4.7683716e-07
        %v431 = vsub.f32 %v430, 2.0
        %v432 = vsub.f32 %v431, %v357
        %v433 = vmul.f32 %v432, 1.442695
        %v434 = vpow.pop %v433
        %v435 = vand.u32 %v427, 127
        %vm436 = vcmp.eq.s32.totalorder %v261, %v435
        %v437 = vsel %vm436, %v434, %v411
        %v438 = vadd.f32 %v412, %v434
        %v439 = vsel %vm436, 4294967295, %v413
        %v440 = vand.u32 %v439, 65535
        %v441 = vshra.s32 %v439, 16
        %v442 = vcvt.s32.f32 %v440
        %v443 = vcvt.s32.f32 %v441
        %444 = vmax.xlane.f32.xlu0 %v443
        %v445 = vpop.xlane.xlu0 %444
        %vm446 = vcmp.eq.f32.partialorder %v443, %v445
        %v447 = vsel %vm446, %v442, -inf
        %448 = vmax.xlane.f32.xlu0 %v447
        %v449 = vpop.xlane.xlu0 %448
        %v450 = vcvt.f32.s32 %v449
        %v451 = vcvt.f32.s32 %v445
        %v452 = vshll.u32 %v451, 16
        %v453 = vadd.s32 %v452, %v450
        %v454 = vshra.s32 %v453, 7
        %v455 = vcvt.s32.f32 %v454
        %v456 = vmul.f32 %v455, 4.7683716e-07
        %v457 = vsub.f32 %v456, 2.0
        %v458 = vsub.f32 %v457, %v357
        %v459 = vmul.f32 %v458, 1.442695
        %v460 = vpow.pop %v459
        %v461 = vand.u32 %v453, 127
        %vm462 = vcmp.eq.s32.totalorder %v261, %v461
        %v463 = vsel %vm462, %v460, %v437
        %v464 = vadd.f32 %v438, %v460
        %v465 = vsel %vm462, 4294967295, %v439
        %v466 = vand.u32 %v465, 65535
        %v467 = vshra.s32 %v465, 16
        %v468 = vcvt.s32.f32 %v466
        %v469 = vcvt.s32.f32 %v467
        %470 = vmax.xlane.f32.xlu0 %v469
        %v471 = vpop.xlane.xlu0 %470
        %vm472 = vcmp.eq.f32.partialorder %v469, %v471
        %v473 = vsel %vm472, %v468, -inf
        %474 = vmax.xlane.f32.xlu0 %v473
        %v475 = vpop.xlane.xlu0 %474
        %v476 = vcvt.f32.s32 %v475
        %v477 = vcvt.f32.s32 %v471
        %v478 = vshll.u32 %v477, 16
        %v479 = vadd.s32 %v478, %v476
        %v480 = vshra.s32 %v479, 7
        %v481 = vcvt.s32.f32 %v480
        %v482 = vmul.f32 %v481, 4.7683716e-07
        %v483 = vsub.f32 %v482, 2.0
        %v484 = vsub.f32 %v483, %v357
        %v485 = vmul.f32 %v484, 1.442695
        %v486 = vpow.pop %v485
        %v487 = vand.u32 %v479, 127
        %vm488 = vcmp.eq.s32.totalorder %v261, %v487
        %v489 = vsel %vm488, %v486, %v463
        %v490 = vadd.f32 %v464, %v486
        %v491 = vsel %vm488, 4294967295, %v465
        %v492 = vand.u32 %v491, 65535
        %v493 = vshra.s32 %v491, 16
        %v494 = vcvt.s32.f32 %v492
        %v495 = vcvt.s32.f32 %v493
        %496 = vmax.xlane.f32.xlu0 %v495
        %v497 = vpop.xlane.xlu0 %496
        %vm498 = vcmp.eq.f32.partialorder %v495, %v497
        %v499 = vsel %vm498, %v494, -inf
        %500 = vmax.xlane.f32.xlu0 %v499
        %v501 = vpop.xlane.xlu0 %500
        %v502 = vcvt.f32.s32 %v501
        %v503 = vcvt.f32.s32 %v497
        %v504 = vshll.u32 %v503, 16
        %v505 = vadd.s32 %v504, %v502
        %v506 = vshra.s32 %v505, 7
        %v507 = vcvt.s32.f32 %v506
        %v508 = vmul.f32 %v507, 4.7683716e-07
        %v509 = vsub.f32 %v508, 2.0
        %v510 = vsub.f32 %v509, %v357
        %v511 = vmul.f32 %v510, 1.442695
        %v512 = vpow.pop %v511
        %v513 = vand.u32 %v505, 127
        %vm514 = vcmp.eq.s32.totalorder %v261, %v513
        %v515 = vsel %vm514, %v512, %v489
        %v516 = vadd.f32 %v490, %v512
        %v517 = vsel %vm514, 4294967295, %v491
        %v518 = vand.u32 %v517, 65535
        %v519 = vshra.s32 %v517, 16
        %v520 = vcvt.s32.f32 %v518
        %v521 = vcvt.s32.f32 %v519
        %522 = vmax.xlane.f32.xlu0 %v521
        %v523 = vpop.xlane.xlu0 %522
        %vm524 = vcmp.eq.f32.partialorder %v521, %v523
        %v525 = vsel %vm524, %v520, -inf
        %526 = vmax.xlane.f32.xlu0 %v525
        %v527 = vpop.xlane.xlu0 %526
        %v528 = vcvt.f32.s32 %v527
        %v529 = vcvt.f32.s32 %v523
        %v530 = vshll.u32 %v529, 16
        %v531 = vadd.s32 %v530, %v528
        %v532 = vshra.s32 %v531, 7
        %v533 = vcvt.s32.f32 %v532
        %v534 = vmul.f32 %v533, 4.7683716e-07
        %v535 = vsub.f32 %v534, 2.0
        %v536 = vsub.f32 %v535, %v357
        %v537 = vmul.f32 %v536, 1.442695
        %v538 = vpow.pop %v537
        %v539 = vand.u32 %v531, 127
        %vm540 = vcmp.eq.s32.totalorder %v261, %v539
        %v541 = vsel %vm540, %v538, %v515
        %v542 = vadd.f32 %v516, %v538
        %v543 = vsel %vm540, 4294967295, %v517
        %v544 = vand.u32 %v543, 65535
        %v545 = vshra.s32 %v543, 16
        %v546 = vcvt.s32.f32 %v544
        %v547 = vcvt.s32.f32 %v545
        %548 = vmax.xlane.f32.xlu0 %v547
        %v549 = vpop.xlane.xlu0 %548
        %vm550 = vcmp.eq.f32.partialorder %v547, %v549
        %v551 = vsel %vm550, %v546, -inf
        %552 = vmax.xlane.f32.xlu0 %v551
        %v553 = vpop.xlane.xlu0 %552
        %v554 = vcvt.f32.s32 %v553
        %v555 = vcvt.f32.s32 %v549
        %v556 = vshll.u32 %v555, 16
        %v557 = vadd.s32 %v556, %v554
        %v558 = vshra.s32 %v557, 7
        %v559 = vcvt.s32.f32 %v558
        %v560 = vmul.f32 %v559, 4.7683716e-07
        %v561 = vsub.f32 %v560, 2.0
        %v562 = vsub.f32 %v561, %v357
        %v563 = vmul.f32 %v562, 1.442695
        %v564 = vpow.pop %v563
        %v565 = vand.u32 %v557, 127
        %vm566 = vcmp.eq.s32.totalorder %v261, %v565
        %v567 = vsel %vm566, %v564, %v541
        %v568 = vadd.f32 %v542, %v564
        %v569 = vsel %vm566, 4294967295, %v543
        %v570 = vand.u32 %v569, 65535
        %v571 = vshra.s32 %v569, 16
        %v572 = vcvt.s32.f32 %v570
        %v573 = vcvt.s32.f32 %v571
        %574 = vmax.xlane.f32.xlu0 %v573
        %v575 = vpop.xlane.xlu0 %574
        %vm576 = vcmp.eq.f32.partialorder %v573, %v575
        %v577 = vsel %vm576, %v572, -inf
        %578 = vmax.xlane.f32.xlu0 %v577
        %v579 = vpop.xlane.xlu0 %578
        %v580 = vcvt.f32.s32 %v579
        %v581 = vcvt.f32.s32 %v575
        %v582 = vshll.u32 %v581, 16
        %v583 = vadd.s32 %v582, %v580
        %v584 = vshra.s32 %v583, 7
        %v585 = vcvt.s32.f32 %v584
        %v586 = vmul.f32 %v585, 4.7683716e-07
        %v587 = vsub.f32 %v586, 2.0
        %v588 = vsub.f32 %v587, %v357
        %v589 = vmul.f32 %v588, 1.442695
        %v590 = vpow.pop %v589
        %v591 = vand.u32 %v583, 127
        %vm592 = vcmp.eq.s32.totalorder %v261, %v591
        %v593 = vsel %vm592, %v590, %v567
        %v594 = vadd.f32 %v568, %v590
        %v595 = vrcp.pop %v594
        %v596 = vmul.f32 %v593, %v595
        %v597 = vld [vmem:[#allocation5] sm:$0xff]
        %v598 = vld [vmem:[#allocation5 + $0x8] sm:$0xff]
        %v599 = vld [vmem:[#allocation5 + $0x10] sm:$0xff]
        %v600 = vld [vmem:[#allocation5 + $0x18] sm:$0xff]
        %v601 = vld [vmem:[#allocation5 + $0x20] sm:$0xff]
        %v602 = vld [vmem:[#allocation5 + $0x28] sm:$0xff]
        %v603 = vld [vmem:[#allocation5 + $0x30] sm:$0xff]
        %v604 = vld [vmem:[#allocation5 + $0x38] sm:$0xff]
        %v605 = vld [vmem:[#allocation5 + $0x40] sm:$0xff]
        %v606 = vld [vmem:[#allocation5 + $0x48] sm:$0xff]
        %v607 = vld [vmem:[#allocation5 + $0x50] sm:$0xff]
        %v608 = vld [vmem:[#allocation5 + $0x58] sm:$0xff]
        %v609 = vld [vmem:[#allocation5 + $0x60] sm:$0xff]
        %v610 = vld [vmem:[#allocation5 + $0x68] sm:$0xff]
        %v611 = vld [vmem:[#allocation5 + $0x70] sm:$0xff]
        %v612 = vld [vmem:[#allocation5 + $0x78] sm:$0xff]
        %v613 = vld [vmem:[#allocation5 + $0x80] sm:$0xff]
        %v614 = vld [vmem:[#allocation5 + $0x88] sm:$0xff]
        %v615 = vld [vmem:[#allocation5 + $0x90] sm:$0xff]
        %v616 = vld [vmem:[#allocation5 + $0x98] sm:$0xff]
        %v617 = vld [vmem:[#allocation5 + $0xa0] sm:$0xff]
        %v618 = vld [vmem:[#allocation5 + $0xa8] sm:$0xff]
        %v619 = vld [vmem:[#allocation5 + $0xb0] sm:$0xff]
        %v620 = vld [vmem:[#allocation5 + $0xb8] sm:$0xff]
        %v621 = vld [vmem:[#allocation5 + $0xc0] sm:$0xff]
        %v622 = vld [vmem:[#allocation5 + $0xc8] sm:$0xff]
        %v623 = vld [vmem:[#allocation5 + $0xd0] sm:$0xff]
        %v624 = vld [vmem:[#allocation5 + $0xd8] sm:$0xff]
        %v625 = vld [vmem:[#allocation5 + $0xe0] sm:$0xff]
        %v626 = vld [vmem:[#allocation5 + $0xe8] sm:$0xff]
        %v627 = vld [vmem:[#allocation5 + $0xf0] sm:$0xff]
        %v628 = vld [vmem:[#allocation5 + $0xf8] sm:$0xff]
        %629 = vmatprep.subr.mxu0 %v598
        %630 = vmatpush1.msra.mxu0 %v597
        %631 = vmatprep.subr.mxu0 %v600
        %632 = vmatpush1.msra.mxu0 %v599
        %633 = vmatprep.subr.mxu0 %v602
        %634 = vmatpush1.msra.mxu0 %v601
        %635 = vmatprep.subr.mxu0 %v604
        %636 = vmatpush1.msra.mxu0 %v603
        %637 = vmatprep.subr.mxu0 %v606
        %638 = vmatpush1.msra.mxu0 %v605
        %639 = vmatprep.subr.mxu0 %v608
        %640 = vmatpush1.msra.mxu0 %v607
        %641 = vmatprep.subr.mxu0 %v610
        %642 = vmatpush1.msra.mxu0 %v609
        %643 = vmatprep.subr.mxu0 %v612
        %644 = vmatpush1.msra.mxu0 %v611
        %645 = vmatprep.subr.mxu0 %v614
        %646 = vmatpush1.msra.mxu0 %v613
        %647 = vmatprep.subr.mxu0 %v616
        %648 = vmatpush1.msra.mxu0 %v615
        %649 = vmatprep.subr.mxu0 %v618
        %650 = vmatpush1.msra.mxu0 %v617
        %651 = vmatprep.subr.mxu0 %v620
        %652 = vmatpush1.msra.mxu0 %v619
        %653 = vmatprep.subr.mxu0 %v622
        %654 = vmatpush1.msra.mxu0 %v621
        %655 = vmatprep.subr.mxu0 %v624
        %656 = vmatpush1.msra.mxu0 %v623
        %657 = vmatprep.subr.mxu0 %v626
        %658 = vmatpush1.msra.mxu0 %v625
        %659 = vmatprep.subr.mxu0 %v628
        %660 = vmatpush1.msra.mxu0 %v627
        %661 = vmatprep.subr.mxu0 0.0
        %662 = vmatpush1.msra.mxu0 0.0
        %663 = vmatprep.subr.mxu0 0.0
        %664 = vmatpush1.msra.mxu0 0.0
        %665 = vmatprep.subr.mxu0 0.0
        %666 = vmatpush1.msra.mxu0 0.0
        %667 = vmatprep.subr.mxu0 0.0
        %668 = vmatpush1.msra.mxu0 0.0
        %669 = vmatprep.subr.mxu0 0.0
        %670 = vmatpush1.msra.mxu0 0.0
        %671 = vmatprep.subr.mxu0 0.0
        %672 = vmatpush1.msra.mxu0 0.0
        %673 = vmatprep.subr.mxu0 0.0
        %674 = vmatpush1.msra.mxu0 0.0
        %675 = vmatprep.subr.mxu0 0.0
        %676 = vmatpush1.msra.mxu0 0.0
        %677 = vmatprep.subr.mxu0 0.0
        %678 = vmatpush1.msra.mxu0 0.0
        %679 = vmatprep.subr.mxu0 0.0
        %680 = vmatpush1.msra.mxu0 0.0
        %681 = vmatprep.subr.mxu0 0.0
        %682 = vmatpush1.msra.mxu0 0.0
        %683 = vmatprep.subr.mxu0 0.0
        %684 = vmatpush1.msra.mxu0 0.0
        %685 = vmatprep.subr.mxu0 0.0
        %686 = vmatpush1.msra.mxu0 0.0
        %687 = vmatprep.subr.mxu0 0.0
        %688 = vmatpush1.msra.mxu0 0.0
        %689 = vmatprep.subr.mxu0 0.0
        %690 = vmatpush1.msra.mxu0 0.0
        %691 = vmatprep.subr.mxu0 0.0
        %692 = vmatpush1.msra.mxu0 0.0
        %693 = vmatprep.mubr.f32.mxu0 0.0
        %694 = vmatmul.mubr.f32.gmra.mrb[0].mxu0 %v596
        %v695 = vpop.f32.mrb[0].mxu0
        %v696 = vadd.f32 0.0, %v695
        %v697 = vpop.f32.mrb[0].mxu0
        %v698 = vadd.f32 0.0, %v697
        %699 = vdwg.mxu0
        %700 = vst [vmem:[%s215] sm:$0xff] %v696
        %701 = vst [vmem:[%s215 + $0x8] sm:$0xff] %v698
        %s702 = sand.u32 %s97, 1
        %s703 = scalar_lea.sflag [#allocation4], %s702
        %s704 = sand.u32 %s97, 1
        %s705 = smul.addr %s704, 16
        %s706 = scalar_lea.vmem [#allocation8], %s705
        // Predicated region
        $region45: #{tpu_custom_call.1} parent=31 // pred_check
          %p707 = pneg %p107
        $region46: #{tpu_custom_call.1} parent=31 // pred_check_branch
          %709 = sbr.rel (%p707) target = $region48
        $region47: #{tpu_custom_call.1} parent=31 // pred_region
          %s711 = ssub.s32 256, 256
          %712 = vsyncadd %s703, %s711
          %s713 = smul.addr %s21, 2
          %s714 = smul.addr %s713, 128
          %s715 = scalar_lea.hbm %s3, %s714
          %s717 = sshll.u32 %s706, 4
          %s718 = int_to_ptr.vmem [resolvable:$true] %s717
          %720 = dma.vmem_to_hbm [thread:$0]  %s718, 256, %s715, %s703
        $region48: #{tpu_custom_call.1} parent=31 // pred_fallthru
          _
      $region32: #{tpu_custom_call.1} parent=5 // pred_fallthru
        _
      %p721 = scmp.le.s32.totalorder 2, %s16
      // Predicated region
      $region49: #{tpu_custom_call.1} parent=5 // pred_check
        %p722 = pneg %p721
      $region50: #{tpu_custom_call.1} parent=5 // pred_check_branch
        %724 = sbr.rel (%p722) target = $region52
      $region51: #{tpu_custom_call.1} parent=5 // pred_region
        %s725 = ssub.s32 %s16, 2
        // Predicated region
        $region53: #{tpu_custom_call.1} parent=51 // pred_check
          %p726 = pneg %p113
        $region54: #{tpu_custom_call.1} parent=51 // pred_check_branch
          %728 = sbr.rel (%p726) target = $region56
        $region55: #{tpu_custom_call.1} parent=51 // pred_region
          %s729 = sand.u32 %s98, 1
          %s730 = scalar_lea.sflag [#allocation4], %s729
          %s731 = sand.u32 %s98, 1
          %s732 = smul.addr %s731, 16
          %s733 = scalar_lea.vmem [#allocation8], %s732
          %734 = dma.done %s730, 256
        $region56: #{tpu_custom_call.1} parent=51 // pred_fallthru
          _
      $region52: #{tpu_custom_call.1} parent=5 // pred_fallthru
        _
    $region6: #{tpu_custom_call.1} parent=1 // loop_footer
      %s20 = sadd.s32 1, %s16
    $region7: #{tpu_custom_call.1} parent=1 // loop_footer_branch
      %15 = sbr.rel target = $region3
    $region8: #{tpu_custom_call.1} parent=1 // loop_exit
      _
    %735 = vsyncpa [#allocation3], 1
    %s736 = scalar_lea.sflag [#allocation3], 1
    %737 = vsyncpa %s736, 1
    %738 = vsyncpa [#allocation6], 1
    %739 = vsyncpa [#allocation4], 1
    %s740 = scalar_lea.sflag [#allocation4], 1
    %741 = vsyncpa %s740, 1

</llo_original>
